<compile_context>
chip_gen: v6e
topology: v6e:2x2x1
jax: 0.10.0
libtpu: 0.0.40
codegen_flags: <defaults>
</compile_context>

<pallas_src>
import functools

import numpy as np
import jax
import jax.numpy as jnp
from jax.experimental import pallas as pl
from jax.experimental.pallas import tpu as pltpu


def _gbn_kernel(x_ref, gamma_ref, beta_ref, o_ref, *,
                group_stride, chunk_size, last_chunk_size, num_chunks, eps):
    """One grid step: normalize K fused ghost batches.

    x_ref/o_ref:        (K, rows_per_chunk, lanes)  lanes = s * D_tile
    gamma_ref/beta_ref: (1, lanes)                  gamma/beta tiled s times
    """
    K, _, lanes = x_ref.shape

    x = x_ref[...].astype(jnp.float32)

    # One-pass statistics: x is read once for both sum and sum-of-squares.
    s1 = jnp.sum(x, axis=1)                      # (K, lanes)
    s2 = jnp.sum(x * x, axis=1)                  # (K, lanes)

    # Fold the s lane-packed groups (no-op when group_stride >= lanes).  After
    # the doubling cyclic rolls every lane holds its feature's full chunk sum.
    sh = group_stride
    while sh < lanes:
        s1 = s1 + pltpu.roll(s1, sh, axis=1)
        s2 = s2 + pltpu.roll(s2, sh, axis=1)
        sh *= 2

    # True sample count per chunk (the last ghost batch may be ragged).
    cid = jax.lax.broadcasted_iota(jnp.int32, (K, lanes), 0) + pl.program_id(0) * K
    inv_n = jnp.where(cid == num_chunks - 1,
                      jnp.float32(1.0 / last_chunk_size),
                      jnp.float32(1.0 / chunk_size))

    mean = s1 * inv_n
    var = s2 * inv_n - mean * mean               # biased variance (training BN)

    # Fold normalization + affine into a single mul/add per element.
    scale = jax.lax.rsqrt(var + eps) * gamma_ref[...]     # (K, lanes)
    shift = beta_ref[...] - mean * scale                  # (K, lanes)

    o_ref[...] = (x * scale[:, None, :] + shift[:, None, :]).astype(o_ref.dtype)


def _pick_feature_tile(d, max_tile=512):
    """Largest 128-multiple divisor of d that is <= max_tile, else full d."""
    if d <= max_tile:
        return d
    best = d
    for t in range(128, max_tile + 1, 128):
        if d % t == 0:
            best = t
    return best


def _pick_chunks_per_block(num_chunks, rows_per_chunk, lane_tile, itemsize,
                           target_rows=1024, max_block_bytes=1 << 20):
    """How many ghost batches to fuse per grid step (must divide num_chunks)."""
    divisors = [k for k in range(1, num_chunks + 1) if num_chunks % k == 0]
    sized = [k for k in divisors
             if k * rows_per_chunk <= target_rows
             and k * rows_per_chunk * lane_tile * itemsize <= max_block_bytes]
    pool = sized if sized else divisors[:1]
    k = max(pool)
    if num_chunks // k < 2:
        # Leave >=2 row-blocks when possible so both v7x TensorCores get work.
        alt = [kk for kk in pool if num_chunks // kk >= 2]
        if alt:
            k = max(alt)
    return k


def ghost_bn(x, gamma, beta, *, virtual_batch_size=128, epsilon=0.1):
    """Ghost BatchNorm forward (training-mode statistics per virtual batch).

    x: (B, D), gamma/beta: (D,).  epsilon default matches the module spec
    (ghost_BN passes eps=epsilon with epsilon=0.1 by default).
    """
    B, D = x.shape
    orig_dtype = x.dtype

    num_chunks = -(-B // virtual_batch_size)          # ceil, like torch.chunk count
    per = -(-B // num_chunks)                         # torch.chunk chunk size
    last = B - (num_chunks - 1) * per                 # size of (possibly ragged) last chunk

    # Pad ragged batches with zero rows; zeros don't perturb the one-pass sums
    # and the kernel divides by the true per-chunk count. Padded rows are
    # sliced off at the end.
    b_pad = num_chunks * per
    if b_pad != B:
        x = jnp.pad(x, ((0, b_pad - B), (0, 0)))

    # Lane packing: put s sample rows side by side along lanes so small D still
    # fills all 128 lanes (lane-dense, unmasked stores).
    s = 1
    if D < 128 and 128 % D == 0 and per % (128 // D) == 0:
        s = 128 // D
    rpc = per // s                                    # rows per chunk, packed layout
    L = s * D                                         # packed lane width

    lane_tile = L if s > 1 else _pick_feature_tile(L)
    num_feat_tiles = L // lane_tile

    K = _pick_chunks_per_block(num_chunks, rpc, lane_tile,
                               np.dtype(orig_dtype).itemsize)

    x3 = x.reshape(num_chunks, rpc, L)                # free row-major reshape
    gamma_l = jnp.tile(gamma.astype(jnp.float32), s).reshape(1, L)
    beta_l = jnp.tile(beta.astype(jnp.float32), s).reshape(1, L)

    kernel = functools.partial(
        _gbn_kernel,
        group_stride=D,
        chunk_size=per,
        last_chunk_size=last,
        num_chunks=num_chunks,
        eps=float(epsilon),
    )

    out3 = pl.pallas_call(
        kernel,
        out_shape=jax.ShapeDtypeStruct((num_chunks, rpc, L), orig_dtype),
        grid_spec=pltpu.PrefetchScalarGridSpec(
            num_scalar_prefetch=0,
            grid=(num_chunks // K, num_feat_tiles),
            in_specs=[
                pl.BlockSpec((K, rpc, lane_tile), lambda i, j: (i, 0, j)),   # x
                pl.BlockSpec((1, lane_tile), lambda i, j: (0, j)),           # gamma
                pl.BlockSpec((1, lane_tile), lambda i, j: (0, j)),           # beta
            ],
            out_specs=pl.BlockSpec((K, rpc, lane_tile), lambda i, j: (i, 0, j)),
        ),
        compiler_params=pltpu.CompilerParams(
            dimension_semantics=("parallel", "parallel"),
            vmem_limit_bytes=32 * 1024 * 1024,
        ),
    )(x3, gamma_l, beta_l)

    out = out3.reshape(b_pad, D)
    if b_pad != B:
        out = out[:B]
    # TODO(synk): running-mean/var (momentum) buffers are not updated; they do
    # not affect the training-mode forward output reproduced here.
    return out


def ghost_bn_ref(x, gamma, beta, *, virtual_batch_size=128, epsilon=0.1):
    """Pure-JAX reference matching PyTorch ghost_BN forward in training mode."""
    B, _ = x.shape
    num_chunks = -(-B // virtual_batch_size)
    per = -(-B // num_chunks)                         # torch.chunk chunk size
    outs = []
    for start in range(0, B, per):
        c = x[start:start + per].astype(jnp.float32)
        m = c.mean(axis=0, keepdims=True)
        v = ((c - m) ** 2).mean(axis=0, keepdims=True)
        outs.append((c - m) / jnp.sqrt(v + epsilon) * gamma + beta)
    return jnp.concatenate(outs, axis=0).astype(x.dtype)


if __name__ == "__main__":
    key = jax.random.PRNGKey(0)
    k1, k2, k3, k4 = jax.random.split(key, 4)

    # Config 1: even chunks, D=32 -> lane-packed path (4 sample rows per vreg row).
    B1, D1, vbs1 = 16, 32, 8
    x1 = jax.random.normal(k1, (B1, D1), dtype=jnp.float32)
    g1 = 1.0 + 0.1 * jax.random.normal(k2, (D1,), dtype=jnp.float32)
    b1 = 0.1 * jax.random.normal(k3, (D1,), dtype=jnp.float32)
    out1 = jax.block_until_ready(
        ghost_bn(x1, g1, b1, virtual_batch_size=vbs1, epsilon=0.1))
    ref1 = ghost_bn_ref(x1, g1, b1, virtual_batch_size=vbs1, epsilon=0.1)
    np.testing.assert_allclose(np.asarray(out1), np.asarray(ref1),
                               rtol=1e-4, atol=1e-5)

    # Config 2: ragged batch (20 rows -> chunks of 7/7/6) -> un-packed path + padding.
    B2, D2, vbs2 = 20, 24, 8
    x2 = jax.random.normal(k4, (B2, D2), dtype=jnp.float32)
    g2 = jnp.ones((D2,), dtype=jnp.float32)
    b2 = jnp.zeros((D2,), dtype=jnp.float32)
    out2 = jax.block_until_ready(
        ghost_bn(x2, g2, b2, virtual_batch_size=vbs2, epsilon=0.1))
    ref2 = ghost_bn_ref(x2, g2, b2, virtual_batch_size=vbs2, epsilon=0.1)
    np.testing.assert_allclose(np.asarray(out2), np.asarray(ref2),
                               rtol=1e-4, atol=1e-5)

    print("KERNEL_OK")
</pallas_src>

<mosaic_0001>
module attributes {stable_mosaic.version = 11 : i64} {
  func.func @_gbn_kernel(%arg0: i32, %arg1: i32, %arg2: memref<1x2x128xf32, #tpu.memory_space<vmem>>, %arg3: memref<1x128xf32, #tpu.memory_space<vmem>>, %arg4: memref<1x128xf32, #tpu.memory_space<vmem>>, %arg5: memref<1x2x128xf32, #tpu.memory_space<vmem>>) attributes {dimension_semantics = [#tpu.dimension_semantics<parallel>, #tpu.dimension_semantics<parallel>], iteration_bounds = array<i64: 2, 1>, scalar_prefetch = 0 : i64, scratch_operands = 0 : i64, tpu.core_type = #tpu.core_type<tc>, window_params = [{transform_indices = @transform_0, window_bounds = array<i64: 1, 2, 128>}, {transform_indices = @transform_1, window_bounds = array<i64: 1, 128>}, {transform_indices = @transform_2, window_bounds = array<i64: 1, 128>}, {transform_indices = @transform_3, window_bounds = array<i64: 1, 2, 128>}]} {
    %c0 = arith.constant 0 : index
    %c0_0 = arith.constant 0 : index
    %c0_1 = arith.constant 0 : index
    %0 = vector.load %arg2[%c0, %c0_0, %c0_1] : memref<1x2x128xf32, #tpu.memory_space<vmem>>, vector<1x2x128xf32>
    %cst = arith.constant dense<0.000000e+00> : vector<1x128xf32>
    %1 = vector.multi_reduction <add>, %0, %cst [1] : vector<1x2x128xf32> to vector<1x128xf32>
    %2 = arith.mulf %0, %0 : vector<1x2x128xf32>
    %cst_2 = arith.constant dense<0.000000e+00> : vector<1x128xf32>
    %3 = vector.multi_reduction <add>, %2, %cst_2 [1] : vector<1x2x128xf32> to vector<1x128xf32>
    %c32_i32 = arith.constant 32 : i32
    %4 = tpu.dynamic_rotate %1 by %c32_i32 dim 1 : vector<1x128xf32>, i32 -> vector<1x128xf32>
    %5 = arith.addf %1, %4 : vector<1x128xf32>
    %c32_i32_3 = arith.constant 32 : i32
    %6 = tpu.dynamic_rotate %3 by %c32_i32_3 dim 1 : vector<1x128xf32>, i32 -> vector<1x128xf32>
    %7 = arith.addf %3, %6 : vector<1x128xf32>
    %c64_i32 = arith.constant 64 : i32
    %8 = tpu.dynamic_rotate %5 by %c64_i32 dim 1 : vector<1x128xf32>, i32 -> vector<1x128xf32>
    %9 = arith.addf %5, %8 : vector<1x128xf32>
    %c64_i32_4 = arith.constant 64 : i32
    %10 = tpu.dynamic_rotate %7 by %c64_i32_4 dim 1 : vector<1x128xf32>, i32 -> vector<1x128xf32>
    %11 = arith.addf %7, %10 : vector<1x128xf32>
    %12 = tpu.iota {dimensions = array<i32: 0>} : vector<1x128xi32>
    %c1_i32 = arith.constant 1 : i32
    %13 = arith.muli %arg0, %c1_i32 : i32
    %14 = vector.broadcast %13 : i32 to vector<1x128xi32>
    %15 = arith.addi %12, %14 : vector<1x128xi32>
    %c1_i32_5 = arith.constant 1 : i32
    %16 = vector.broadcast %c1_i32_5 : i32 to vector<1x128xi32>
    %17 = arith.cmpi eq, %15, %16 : vector<1x128xi32>
    %cst_6 = arith.constant 1.250000e-01 : f32
    %cst_7 = arith.constant 1.250000e-01 : f32
    %18 = vector.broadcast %cst_6 : f32 to vector<1x128xf32>
    %19 = vector.broadcast %cst_7 : f32 to vector<1x128xf32>
    %20 = arith.select %17, %18, %19 : vector<1x128xi1>, vector<1x128xf32>
    %21 = arith.mulf %9, %20 : vector<1x128xf32>
    %22 = arith.mulf %11, %20 : vector<1x128xf32>
    %23 = arith.mulf %21, %21 : vector<1x128xf32>
    %24 = arith.subf %22, %23 : vector<1x128xf32>
    %cst_8 = arith.constant 1.000000e-01 : f32
    %25 = vector.broadcast %cst_8 : f32 to vector<1x128xf32>
    %26 = arith.addf %24, %25 : vector<1x128xf32>
    %27 = math.rsqrt %26 : vector<1x128xf32>
    %c0_9 = arith.constant 0 : index
    %c0_10 = arith.constant 0 : index
    %28 = vector.load %arg3[%c0_9, %c0_10] : memref<1x128xf32, #tpu.memory_space<vmem>>, vector<1x128xf32>
    %29 = arith.mulf %27, %28 : vector<1x128xf32>
    %c0_11 = arith.constant 0 : index
    %c0_12 = arith.constant 0 : index
    %30 = vector.load %arg4[%c0_11, %c0_12] : memref<1x128xf32, #tpu.memory_space<vmem>>, vector<1x128xf32>
    %31 = arith.mulf %21, %29 : vector<1x128xf32>
    %32 = arith.subf %30, %31 : vector<1x128xf32>
    %33 = vector.shape_cast %29 : vector<1x128xf32> to vector<1x1x128xf32>
    %34 = vector.broadcast %33 : vector<1x1x128xf32> to vector<1x2x128xf32>
    %35 = arith.mulf %0, %34 : vector<1x2x128xf32>
    %36 = vector.shape_cast %32 : vector<1x128xf32> to vector<1x1x128xf32>
    %37 = vector.broadcast %36 : vector<1x1x128xf32> to vector<1x2x128xf32>
    %38 = arith.addf %35, %37 : vector<1x2x128xf32>
    %c0_13 = arith.constant 0 : index
    %c0_14 = arith.constant 0 : index
    %c0_15 = arith.constant 0 : index
    %39 = vector.load %arg5[%c0_13, %c0_14, %c0_15] : memref<1x2x128xf32, #tpu.memory_space<vmem>>, vector<1x2x128xf32>
    tpu.vector_store %arg5[%c0_13, %c0_14, %c0_15], %38 {strides = array<i32>} : memref<1x2x128xf32, #tpu.memory_space<vmem>>, vector<1x2x128xf32>,
    return
  }
  func.func @transform_0(%arg0: i32, %arg1: i32) -> (i32, i32, i32) {
    %c0_i32 = arith.constant 0 : i32
    %c0_i32_0 = arith.constant 0 : i32
    return %arg0, %c0_i32, %arg1 : i32, i32, i32
  }
  func.func @transform_1(%arg0: i32, %arg1: i32) -> (i32, i32) {
    %c0_i32 = arith.constant 0 : i32
    %c0_i32_0 = arith.constant 0 : i32
    return %c0_i32, %arg1 : i32, i32
  }
  func.func @transform_2(%arg0: i32, %arg1: i32) -> (i32, i32) {
    %c0_i32 = arith.constant 0 : i32
    %c0_i32_0 = arith.constant 0 : i32
    return %c0_i32, %arg1 : i32, i32
  }
  func.func @transform_3(%arg0: i32, %arg1: i32) -> (i32, i32, i32) {
    %c0_i32 = arith.constant 0 : i32
    %c0_i32_0 = arith.constant 0 : i32
    return %arg0, %c0_i32, %arg1 : i32, i32, i32
  }
}

</mosaic_0001>

<llo_original>
// kernel: tpu_custom_call.1
$region0: #{tpu_custom_call.1}
  #allocation0 [shape = 'u32[]', space=smem, size = 0x4, offset = 0x4, fixed_abs, tag = 'smem constant byte address 0x4 - core index']
  #allocation1 [shape = 'u32[144,128]{1,0:T(1,128)}', space=vmem, size = 0x12000, scoped, tag = 'internal scratch']
  %s0 = inlined_call_operand.hbm [shape: f32[2,2,128], index: 0, kind: input, shape index: {}]
  %s1 = inlined_call_operand.vmem [shape: f32[1,128], index: 1, kind: input, shape index: {}]
  %s2 = inlined_call_operand.vmem [shape: f32[1,128], index: 2, kind: input, shape index: {}]
  %s3 = inlined_call_operand.hbm [shape: f32[2,2,128], index: 3, kind: output, shape index: {}]
  %s4 = sld [smem:[#allocation0]]
  $region49: #{tpu_custom_call.1} parent=0
    _
  %s6 = ssub.s32 1, %s4
  %s7 = scalar_select 0, %s6, %s4
  $region1: #{tpu_custom_call.1} parent=0
    #allocation2 [shape = 'u8[2048]{0}', space=vmem, size = 0x800, scoped, tag = 'input window, operand 0']
    #allocation3 [shape = 's32[2]{0}', space=sflag, size = 0x8, scoped, tag = 'scoped memory for tpu_custom_call.1']
    #allocation4 [shape = 's32[2]{0}', space=sflag, size = 0x8, scoped, tag = 'scoped memory for tpu_custom_call.1']
    #allocation5 [shape = 'u8[2048]{0}', space=vmem, size = 0x800, scoped, tag = 'output window, operand 0']
    %8 = vsyncpa [#allocation3], 0
    %s9 = scalar_lea.sflag [#allocation3], 1
    %10 = vsyncpa %s9, 0
    %11 = vsyncpa [#allocation4], 0
    %s12 = scalar_lea.sflag [#allocation4], 1
    %13 = vsyncpa %s12, 0
    loop: start=0, step=1, limit=4
    $region2: #{tpu_custom_call.1} parent=1 // loop_pre_header
      _
    $region3: #{tpu_custom_call.1} parent=1 // loop_header
      %s15 = sphi 0, %s19
      %p16 = scmp.ge.s32.totalorder %s15, 4
      %s22 = sphi 0, %s34
      %s23 = sphi 0, %s30
      %s24 = sphi 0, %s22
      %s25 = sphi 0, %s23
      %s26 = sphi 0, %s24
      %s27 = sphi 0, %s25
      %s39 = sphi 0, %s41
      %s42 = sphi 0, %s39
      %s43 = sphi 0, %s42
      %s59 = sphi 0, %s43
      %s65 = sphi 0, %s67
      %s68 = sphi 0, %s65
      %s69 = sphi 0, %s68
      %s85 = sphi 0, %s69
      %s91 = sphi 0, %s93
      %s94 = sphi 0, %s91
      %s95 = sphi 0, %s94
      %s111 = sphi 0, %s95
      %s119 = sphi 0, %s121
      %s122 = sphi 0, %s119
      %s123 = sphi 0, %s122
      %s139 = sphi 0, %s123
    $region4: #{tpu_custom_call.1} parent=1 // loop_header_branch
      %18 = sbr.rel (%p16) target = $region8
    $region5: #{tpu_custom_call.1} parent=1 // loop_body
      %s20 = ssub.s32 %s15, 1
      %s21 = ssub.s32 %s15, 2
      %s28 = sadd.s32 1, %s23
      %p29 = scmp.ge.s32.totalorder %s28, 1
      %s30 = scalar_select %p29, 0, %s28
      %s31 = sadd.s32 1, %s22
      %s32 = scalar_select %p29, %s31, %s22
      %p33 = scmp.ge.s32.totalorder %s32, 2
      %s34 = scalar_select %p33, 0, %s32
      %s35 = ssub.s32 %s22, %s34
      %s36 = ssub.s32 %s23, %s30
      %s37 = sor.u32 %s35, %s36
      %p38 = scmp.eq.s32.totalorder %s37, 0
      %s40 = sadd.s32 %s39, 1
      %s41 = scalar_select %p38, %s39, %s40
      %p44 = pneg %p38
      %p45 = scmp.eq.s32.totalorder %s15, 1
      %p46 = por %p44, %p45
      %p47 = scmp.ne.s32.totalorder %s39, %s42
      %p48 = scmp.eq.s32.totalorder %s15, 0
      %p49 = por %p47, %p48
      %p50 = scmp.ne.s32.totalorder %s39, %s42
      %p51 = scmp.eq.s32.totalorder %s20, 1
      %p52 = por %p50, %p51
      %p53 = scmp.ne.s32.totalorder %s42, %s43
      %p54 = scmp.eq.s32.totalorder %s20, 0
      %p55 = por %p53, %p54
      %p56 = scmp.ne.s32.totalorder %s42, %s43
      %p57 = scmp.eq.s32.totalorder %s21, 1
      %p58 = por %p56, %p57
      %p60 = scmp.ne.s32.totalorder %s43, %s59
      %p61 = scmp.eq.s32.totalorder %s21, 0
      %p62 = por %p60, %p61
      %s63 = ssub.s32 %s23, %s30
      %p64 = scmp.eq.s32.totalorder %s63, 0
      %s66 = sadd.s32 %s65, 1
      %s67 = scalar_select %p64, %s65, %s66
      %p70 = pneg %p64
      %p71 = scmp.eq.s32.totalorder %s15, 1
      %p72 = por %p70, %p71
      %p73 = scmp.ne.s32.totalorder %s65, %s68
      %p74 = scmp.eq.s32.totalorder %s15, 0
      %p75 = por %p73, %p74
      %p76 = scmp.ne.s32.totalorder %s65, %s68
      %p77 = scmp.eq.s32.totalorder %s20, 1
      %p78 = por %p76, %p77
      %p79 = scmp.ne.s32.totalorder %s68, %s69
      %p80 = scmp.eq.s32.totalorder %s20, 0
      %p81 = por %p79, %p80
      %p82 = scmp.ne.s32.totalorder %s68, %s69
      %p83 = scmp.eq.s32.totalorder %s21, 1
      %p84 = por %p82, %p83
      %p86 = scmp.ne.s32.totalorder %s69, %s85
      %p87 = scmp.eq.s32.totalorder %s21, 0
      %p88 = por %p86, %p87
      %s89 = ssub.s32 %s23, %s30
      %p90 = scmp.eq.s32.totalorder %s89, 0
      %s92 = sadd.s32 %s91, 1
      %s93 = scalar_select %p90, %s91, %s92
      %p96 = pneg %p90
      %p97 = scmp.eq.s32.totalorder %s15, 1
      %p98 = por %p96, %p97
      %p99 = scmp.ne.s32.totalorder %s91, %s94
      %p100 = scmp.eq.s32.totalorder %s15, 0
      %p101 = por %p99, %p100
      %p102 = scmp.ne.s32.totalorder %s91, %s94
      %p103 = scmp.eq.s32.totalorder %s20, 1
      %p104 = por %p102, %p103
      %p105 = scmp.ne.s32.totalorder %s94, %s95
      %p106 = scmp.eq.s32.totalorder %s20, 0
      %p107 = por %p105, %p106
      %p108 = scmp.ne.s32.totalorder %s94, %s95
      %p109 = scmp.eq.s32.totalorder %s21, 1
      %p110 = por %p108, %p109
      %p112 = scmp.ne.s32.totalorder %s95, %s111
      %p113 = scmp.eq.s32.totalorder %s21, 0
      %p114 = por %p112, %p113
      %s115 = ssub.s32 %s22, %s34
      %s116 = ssub.s32 %s23, %s30
      %s117 = sor.u32 %s115, %s116
      %p118 = scmp.eq.s32.totalorder %s117, 0
      %s120 = sadd.s32 %s119, 1
      %s121 = scalar_select %p118, %s119, %s120
      %p124 = pneg %p118
      %p125 = scmp.eq.s32.totalorder %s15, 1
      %p126 = por %p124, %p125
      %p127 = scmp.ne.s32.totalorder %s119, %s122
      %p128 = scmp.eq.s32.totalorder %s15, 0
      %p129 = por %p127, %p128
      %p130 = scmp.ne.s32.totalorder %s119, %s122
      %p131 = scmp.eq.s32.totalorder %s20, 1
      %p132 = por %p130, %p131
      %p133 = scmp.ne.s32.totalorder %s122, %s123
      %p134 = scmp.eq.s32.totalorder %s20, 0
      %p135 = por %p133, %p134
      %p136 = scmp.ne.s32.totalorder %s122, %s123
      %p137 = scmp.eq.s32.totalorder %s21, 1
      %p138 = por %p136, %p137
      %p140 = scmp.ne.s32.totalorder %s123, %s139
      %p141 = scmp.eq.s32.totalorder %s21, 0
      %p142 = por %p140, %p141
      %p143 = scmp.le.s32.totalorder 1, %s15
      %p144 = scmp.lt.s32.totalorder %s15, 3
      %p145 = pnand %p143, %p144
      %p146 = pneg %p145
      // Predicated region
      $region9: #{tpu_custom_call.1} parent=5 // pred_check
        _
      $region10: #{tpu_custom_call.1} parent=5 // pred_check_branch
        %148 = sbr.rel (%p145) target = $region12
      $region11: #{tpu_custom_call.1} parent=5 // pred_region
        %s149 = ssub.s32 %s15, 1
        // Predicated region
        $region13: #{tpu_custom_call.1} parent=11 // pred_check
          %p150 = pneg %p81
        $region14: #{tpu_custom_call.1} parent=11 // pred_check_branch
          %152 = sbr.rel (%p150) target = $region16
        $region15: #{tpu_custom_call.1} parent=11 // pred_region
          %p153 = scmp.lt.s32.totalorder %s25, 0
          %s154 = scalar_select %p153, %s25, 0
          %s155 = scalar_lea.vmem %s1, %s154
        $region16: #{tpu_custom_call.1} parent=11 // pred_fallthru
          _
        // Predicated region
        $region17: #{tpu_custom_call.1} parent=11 // pred_check
          %p156 = pneg %p107
        $region18: #{tpu_custom_call.1} parent=11 // pred_check_branch
          %158 = sbr.rel (%p156) target = $region20
        $region19: #{tpu_custom_call.1} parent=11 // pred_region
          %p159 = scmp.lt.s32.totalorder %s25, 0
          %s160 = scalar_select %p159, %s25, 0
          %s161 = scalar_lea.vmem %s2, %s160
        $region20: #{tpu_custom_call.1} parent=11 // pred_fallthru
          _
      $region12: #{tpu_custom_call.1} parent=5 // pred_fallthru
        _
      %p162 = scmp.lt.s32.totalorder %s15, 2
      // Predicated region
      $region21: #{tpu_custom_call.1} parent=5 // pred_check
        %p163 = pneg %p162
      $region22: #{tpu_custom_call.1} parent=5 // pred_check_branch
        %165 = sbr.rel (%p163) target = $region24
      $region23: #{tpu_custom_call.1} parent=5 // pred_region
        // Predicated region
        $region25: #{tpu_custom_call.1} parent=23 // pred_check
          %p166 = pneg %p49
        $region26: #{tpu_custom_call.1} parent=23 // pred_check_branch
          %168 = sbr.rel (%p166) target = $region28
        $region27: #{tpu_custom_call.1} parent=23 // pred_region
          %s169 = sand.u32 %s39, 1
          %s170 = scalar_lea.sflag [#allocation3], %s169
          %s171 = sand.u32 %s39, 1
          %s172 = smul.addr %s171, 2
          %s173 = scalar_lea.vmem [#allocation2], %s172
          %s175 = ssub.s32 32, 32
          %176 = vsyncadd %s170, %s175
          %s177 = sadd.s32 %s23, %s22
          %s178 = smul.addr %s177, 32
          %s179 = scalar_lea.hbm %s0, %s178
          %s181 = sshll.u32 %s173, 4
          %s182 = int_to_ptr.vmem [resolvable:$true] %s181
          %184 = dma.hbm_to_vmem [thread:$0]  %s179, 32, %s182, %s170
        $region28: #{tpu_custom_call.1} parent=23 // pred_fallthru
          _
      $region24: #{tpu_custom_call.1} parent=5 // pred_fallthru
        _
      %p185 = scmp.le.s32.totalorder 1, %s15
      %p186 = scmp.lt.s32.totalorder %s15, 3
      %p187 = pnand %p185, %p186
      %p188 = pneg %p187
      // Predicated region
      $region29: #{tpu_custom_call.1} parent=5 // pred_check
        _
      $region30: #{tpu_custom_call.1} parent=5 // pred_check_branch
        %190 = sbr.rel (%p187) target = $region32
      $region31: #{tpu_custom_call.1} parent=5 // pred_region
        %s191 = ssub.s32 %s15, 1
        %s192 = sand.u32 %s42, 1
        %s193 = scalar_lea.sflag [#allocation3], %s192
        %s194 = sand.u32 %s42, 1
        %s195 = smul.addr %s194, 2
        %s196 = scalar_lea.vmem [#allocation2], %s195
        // Predicated region
        $region33: #{tpu_custom_call.1} parent=31 // pred_check
          %p197 = pneg %p55
        $region34: #{tpu_custom_call.1} parent=31 // pred_check_branch
          %199 = sbr.rel (%p197) target = $region36
        $region35: #{tpu_custom_call.1} parent=31 // pred_region
          %200 = dma.done %s193, 32
        $region36: #{tpu_custom_call.1} parent=31 // pred_fallthru
          _
        %s201 = sand.u32 %s42, 1
        %s202 = scalar_lea.sflag [#allocation3], %s201
        %s203 = sand.u32 %s42, 1
        %s204 = smul.addr %s203, 2
        %s205 = scalar_lea.vmem [#allocation2], %s204
        %p206 = pneg %p55
        %p207 = pneg %p52
        %p208 = scmp.lt.s32.totalorder %s25, 0
        %s209 = scalar_select %p208, %s25, 0
        %s210 = scalar_lea.vmem %s1, %s209
        %p211 = pneg %p81
        %p212 = pneg %p78
        %p213 = scmp.lt.s32.totalorder %s25, 0
        %s214 = scalar_select %p213, %s25, 0
        %s215 = scalar_lea.vmem %s2, %s214
        %p216 = pneg %p107
        %p217 = pneg %p104
        %p218 = pneg %p135
        %p219 = pneg %p132
        %s220 = sand.u32 %s122, 1
        %s221 = scalar_lea.sflag [#allocation4], %s220
        %s222 = sand.u32 %s122, 1
        %s223 = smul.addr %s222, 2
        %s224 = scalar_lea.vmem [#allocation5], %s223
        %p225 = scmp.lt.s32.totalorder %s25, 0
        %s226 = scalar_select %p225, %s25, 0
        %s227 = scalar_lea.vmem %s1, %s226
        %p228 = scmp.lt.s32.totalorder %s25, 0
        %s229 = scalar_select %p228, %s25, 0
        %s230 = scalar_lea.vmem %s2, %s229
        %v231 = vld [vmem:[%s196] sm:$0x3]
        %vm232 = vcmask 1041408
        %v233 = vsel %vm232, %v231, 0.0
        %v234 = vrot.slane %v233, 4
        %v235 = vadd.f32 %v233, %v234
        %v236 = vrot.slane %v235, 2
        %v237 = vadd.f32 %v235, %v236
        %v238 = vrot.slane %v237, 1
        %v239 = vadd.f32 %v237, %v238
        %v240 = vmul.f32 %v231, %v231
        %v241 = vsel %vm232, %v240, 0.0
        %v242 = vrot.slane %v241, 4
        %v243 = vadd.f32 %v241, %v242
        %v244 = vrot.slane %v243, 2
        %v245 = vadd.f32 %v243, %v244
        %v246 = vrot.slane %v245, 1
        %v247 = vadd.f32 %v245, %v246
        %248 = vrot.lane.b32.xlu0 %v239, 32
        %v249 = vpop.permute.xlu0 %248
        %v250 = vadd.f32 %v239, %v249
        %251 = vrot.lane.b32.xlu0 %v247, 32
        %v252 = vpop.permute.xlu0 %251
        %v253 = vadd.f32 %v247, %v252
        %254 = vrot.lane.b32.xlu0 %v250, 64
        %v255 = vpop.permute.xlu0 %254
        %v256 = vadd.f32 %v250, %v255
        %257 = vrot.lane.b32.xlu0 %v253, 64
        %v258 = vpop.permute.xlu0 %257
        %v259 = vadd.f32 %v253, %v258
        %v260 = vmul.f32 %v256, 0.125
        %v261 = vmul.f32 %v259, 0.125
        %v262 = vmul.f32 %v260, %v260
        %v263 = vsub.f32 %v261, %v262
        %v264 = vadd.f32 %v263, 0.1
        %v265 = vrsqrt.pop %v264
        %v266 = vld [vmem:[%s227] sm:$0x1]
        %v267 = vmul.f32 %v265, %v266
        %v268 = vld [vmem:[%s230] sm:$0x1]
        %v269 = vmul.f32 %v260, %v267
        %v270 = vsub.f32 %v268, %v269
        %v271 = vlaneseq
        %v272 = vshrl.u32 %v271, 7
        %v273 = vsub.s32 0, %v272
        %v274 = vrot.slane %v267, %v273
        %v275 = vmul.f32 %v231, %v274
        %v277 = vlaneseq
        %v278 = vshrl.u32 %v277, 7
        %v279 = vsub.s32 0, %v278
        %v280 = vrot.slane %v270, %v279
        %v282 = vadd.f32 %v275, %v280
        %283 = vst [vmem:[%s224] sm:$0x3] %v282
        %s284 = sand.u32 %s122, 1
        %s285 = scalar_lea.sflag [#allocation4], %s284
        %s286 = sand.u32 %s122, 1
        %s287 = smul.addr %s286, 2
        %s288 = scalar_lea.vmem [#allocation5], %s287
        // Predicated region
        $region37: #{tpu_custom_call.1} parent=31 // pred_check
          %p289 = pneg %p132
        $region38: #{tpu_custom_call.1} parent=31 // pred_check_branch
          %291 = sbr.rel (%p289) target = $region40
        $region39: #{tpu_custom_call.1} parent=31 // pred_region
          %s293 = ssub.s32 32, 32
          %294 = vsyncadd %s285, %s293
          %s295 = sadd.s32 %s25, %s24
          %s296 = smul.addr %s295, 32
          %s297 = scalar_lea.hbm %s3, %s296
          %s299 = sshll.u32 %s288, 4
          %s300 = int_to_ptr.vmem [resolvable:$true] %s299
          %302 = dma.vmem_to_hbm [thread:$0]  %s300, 32, %s297, %s285
        $region40: #{tpu_custom_call.1} parent=31 // pred_fallthru
          _
      $region32: #{tpu_custom_call.1} parent=5 // pred_fallthru
        _
      %p303 = scmp.le.s32.totalorder 2, %s15
      // Predicated region
      $region41: #{tpu_custom_call.1} parent=5 // pred_check
        %p304 = pneg %p303
      $region42: #{tpu_custom_call.1} parent=5 // pred_check_branch
        %306 = sbr.rel (%p304) target = $region44
      $region43: #{tpu_custom_call.1} parent=5 // pred_region
        %s307 = ssub.s32 %s15, 2
        // Predicated region
        $region45: #{tpu_custom_call.1} parent=43 // pred_check
          %p308 = pneg %p138
        $region46: #{tpu_custom_call.1} parent=43 // pred_check_branch
          %310 = sbr.rel (%p308) target = $region48
        $region47: #{tpu_custom_call.1} parent=43 // pred_region
          %s311 = sand.u32 %s123, 1
          %s312 = scalar_lea.sflag [#allocation4], %s311
          %s313 = sand.u32 %s123, 1
          %s314 = smul.addr %s313, 2
          %s315 = scalar_lea.vmem [#allocation5], %s314
          %316 = dma.done %s312, 32
        $region48: #{tpu_custom_call.1} parent=43 // pred_fallthru
          _
      $region44: #{tpu_custom_call.1} parent=5 // pred_fallthru
        _
    $region6: #{tpu_custom_call.1} parent=1 // loop_footer
      %s19 = sadd.s32 1, %s15
    $region7: #{tpu_custom_call.1} parent=1 // loop_footer_branch
      %14 = sbr.rel target = $region3
    $region8: #{tpu_custom_call.1} parent=1 // loop_exit
      _
    %317 = vsyncpa [#allocation3], 1
    %s318 = scalar_lea.sflag [#allocation3], 1
    %319 = vsyncpa %s318, 1
    %320 = vsyncpa [#allocation4], 1
    %s321 = scalar_lea.sflag [#allocation4], 1
    %322 = vsyncpa %s321, 1

</llo_original>
